<compile_context>
chip_gen: v7x
topology: tpu7x:2x2x1
jax: 0.10.0
libtpu: 0.0.40
codegen_flags: <defaults>
</compile_context>

<pallas_src>
import functools
import math

import jax
import jax.numpy as jnp
from jax.experimental import pallas as pl
from jax.experimental.pallas import tpu as pltpu


def _round_up(x, m):
    return ((x + m - 1) // m) * m


def _mlp_kernel(x_ref, w1_ref, w2_ref, o_ref, acc_ref, *, approx_gelu):
    # x_ref : (tm, E)       native dtype
    # w1_ref: (E,  th)      native dtype (c_fc.weight.T tile)
    # w2_ref: (th, E)       native dtype (c_proj.weight.T tile)
    # o_ref : (tm, E)
    # acc_ref: (tm, E) f32  VMEM accumulator carried across the hidden (reduction) axis
    j = pl.program_id(1)

    @pl.when(j == 0)
    def _():
        acc_ref[...] = jnp.zeros_like(acc_ref)

    # c_fc tile: (tm, E) @ (E, th) on the MXU with f32 accumulation.
    h = jnp.dot(x_ref[...], w1_ref[...], preferred_element_type=jnp.float32)

    # GELU in the f32 accumulation dtype.
    if approx_gelu:
        # tanh approximation -> EUP slot (effectively free when MXU-bound).
        c = math.sqrt(2.0 / math.pi)
        h = 0.5 * h * (1.0 + jnp.tanh(c * (h + 0.044715 * (h * h * h))))
    else:
        # exact erf GELU (matches nn.GELU() default).
        h = 0.5 * h * (1.0 + jax.lax.erf(h * (1.0 / math.sqrt(2.0))))

    # c_proj partial contribution from this hidden tile: (tm, th) @ (th, E).
    acc_ref[...] += jnp.dot(h.astype(w2_ref.dtype), w2_ref[...],
                            preferred_element_type=jnp.float32)

    @pl.when(j == pl.num_programs(1) - 1)
    def _():
        # dropout (inference mode) == identity; downcast accumulator and store.
        o_ref[...] = acc_ref[...].astype(o_ref.dtype)


def _vmem_bytes(tm, E, th, single_h_tile, dsize):
    w_bufs = 1 if single_h_tile else 2            # pl.Buffered(1) when resident
    weights = w_bufs * 2 * E * th * dsize         # W1 tile + W2 tile
    io = 2 * tm * E * dsize * 2                   # x + out, double-buffered
    acc = tm * E * 4                              # f32 accumulator
    inter = tm * th * 4                           # f32 first-matmul intermediate
    return weights + io + acc + inter


def mlp_forward(x, w1, w2, *, tm=None, th=None, approx_gelu=False):
    """Fused GPT MLP forward.

    x : [B, T, E]                 activations
    w1: [E, H] = c_fc.weight.T    (bias-free)
    w2: [H, E] = c_proj.weight.T  (bias-free)
    """
    B, T, E = x.shape
    assert w1.shape[0] == E and w2.shape == (w1.shape[1], E)
    H = w1.shape[1]
    M = B * T
    dsize = jnp.dtype(x.dtype).itemsize

    # ---- M tile: big enough to amortize per-step overhead, multiple of 8 sublanes.
    if tm is None:
        tm = min(512, _round_up(M, 8))
    tm = max(8, _round_up(min(tm, _round_up(M, 8)), 8))
    Mp = _round_up(M, tm)

    # ---- hidden tile: keep per-step VMEM under ~40 MiB so the tiling also fits
    # v7x's 64 MiB/TC VMEM.  When th < H it must be 128-lane aligned.
    if th is None:
        th = H
        budget = 40 * 1024 * 1024
        while th > 128 and _vmem_bytes(tm, E, th, th >= H, dsize) > budget:
            th = max(128, _round_up(th // 2, 128))
    th = min(th, H)
    if th < H:
        assert th % 128 == 0, "hidden tile must be 128-lane aligned when H is split"
    Hp = _round_up(H, th)

    # ---- zero-pad (exact: gelu(0) = 0 and zero rows/cols contribute nothing).
    x2d = x.reshape(M, E)
    if Mp != M:
        x2d = jnp.pad(x2d, ((0, Mp - M), (0, 0)))
    if Hp != H:
        w1 = jnp.pad(w1, ((0, 0), (0, Hp - H)))
        w2 = jnp.pad(w2, ((0, Hp - H), (0, 0)))

    n_m, n_h = Mp // tm, Hp // th

    kernel = functools.partial(_mlp_kernel, approx_gelu=approx_gelu)
    cost = pl.CostEstimate(
        flops=4 * M * E * H,                       # two matmuls
        transcendentals=M * H,                     # one erf/tanh per hidden unit
        bytes_accessed=(2 * M * E + 2 * E * H) * dsize,
    )

    def build(single_buffer_weights):
        wkw = {"pipeline_mode": pl.Buffered(buffer_count=1)} if single_buffer_weights else {}
        return pl.pallas_call(
            kernel,
            out_shape=jax.ShapeDtypeStruct((Mp, E), x.dtype),
            grid_spec=pltpu.PrefetchScalarGridSpec(
                num_scalar_prefetch=0,
                grid=(n_m, n_h),                   # reduction (hidden) axis last
                in_specs=[
                    pl.BlockSpec((tm, E), lambda i, j: (i, 0)),          # x tile
                    pl.BlockSpec((E, th), lambda i, j: (0, j), **wkw),   # W1 tile
                    pl.BlockSpec((th, E), lambda i, j: (j, 0), **wkw),   # W2 tile
                ],
                out_specs=pl.BlockSpec((tm, E), lambda i, j: (i, 0)),
                scratch_shapes=[pltpu.VMEM((tm, E), jnp.float32)],
            ),
            compiler_params=pltpu.CompilerParams(
                dimension_semantics=("parallel", "arbitrary"),
                vmem_limit_bytes=64 * 1024 * 1024,
            ),
            cost_estimate=cost,
        )

    if n_h == 1:
        # Weights are resident across the whole grid -> skip double-buffering them.
        try:
            out = build(True)(x2d, w1, w2)
        except Exception:  # older jax without pipeline_mode / Buffered support
            out = build(False)(x2d, w1, w2)
    else:
        out = build(False)(x2d, w1, w2)

    return out[:M].reshape(B, T, E)


def mlp_reference(x, w1, w2):
    h = jnp.dot(x.astype(jnp.float32), w1.astype(jnp.float32))
    h = 0.5 * h * (1.0 + jax.lax.erf(h / math.sqrt(2.0)))
    return jnp.dot(h, w2.astype(jnp.float32))


if __name__ == "__main__":
    # Small config consistent with the module: n_embd=32, n_hidden=128, dropout=0.0.
    B, T, n_embd, n_hidden = 2, 8, 32, 128

    key = jax.random.PRNGKey(0)
    kx, k1, k2 = jax.random.split(key, 3)

    x = jax.random.normal(kx, (B, T, n_embd), dtype=jnp.float32)
    # nn.Linear-style init, stored pre-transposed (weight.T) for row-major matmuls.
    w1 = jax.random.uniform(k1, (n_embd, n_hidden), dtype=jnp.float32,
                            minval=-1.0 / math.sqrt(n_embd),
                            maxval=1.0 / math.sqrt(n_embd))
    w2 = jax.random.uniform(k2, (n_hidden, n_embd), dtype=jnp.float32,
                            minval=-1.0 / math.sqrt(n_hidden),
                            maxval=1.0 / math.sqrt(n_hidden))

    # f32 run; tm=8 -> 2 M-tiles (multi-step pipelined grid, megacore-shardable on v7x).
    y = jax.block_until_ready(mlp_forward(x, w1, w2, tm=8))
    y_ref = mlp_reference(x, w1, w2)
    assert y.shape == (B, T, n_embd)
    assert jnp.allclose(y, y_ref, atol=1e-5, rtol=1e-5), "f32 mismatch vs reference"

    # bf16 run: exercises the native-dtype MXU path with f32 accumulation.
    xb, w1b, w2b = (a.astype(jnp.bfloat16) for a in (x, w1, w2))
    yb = jax.block_until_ready(mlp_forward(xb, w1b, w2b, tm=8))
    assert yb.dtype == jnp.bfloat16
    assert jnp.allclose(yb.astype(jnp.float32), y_ref, atol=5e-2, rtol=5e-2), \
        "bf16 mismatch vs reference"

    print("KERNEL_OK")
</pallas_src>

<mosaic_0001>
module attributes {stable_mosaic.version = 11 : i64} {
  func.func @_mlp_kernel(%arg0: i32, %arg1: i32, %arg2: memref<8x32xf32, #tpu.memory_space<vmem>>, %arg3: memref<32x128xf32, #tpu.memory_space<vmem>>, %arg4: memref<128x32xf32, #tpu.memory_space<vmem>>, %arg5: memref<8x32xf32, #tpu.memory_space<vmem>>, %arg6: memref<8x32xf32, #tpu.memory_space<vmem>>) attributes {dimension_semantics = [#tpu.dimension_semantics<parallel>, #tpu.dimension_semantics<arbitrary>], iteration_bounds = array<i64: 2, 1>, scalar_prefetch = 0 : i64, scratch_operands = 1 : i64, tpu.core_type = #tpu.core_type<tc>, window_params = [{transform_indices = @transform_0, window_bounds = array<i64: 8, 32>}, {pipeline_mode = #tpu.pipeline_mode<synchronous>, transform_indices = @transform_1, window_bounds = array<i64: 32, 128>}, {pipeline_mode = #tpu.pipeline_mode<synchronous>, transform_indices = @transform_2, window_bounds = array<i64: 128, 32>}, {transform_indices = @transform_3, window_bounds = array<i64: 8, 32>}]} {
    %c0_i32 = arith.constant 0 : i32
    %0 = arith.cmpi eq, %arg1, %c0_i32 : i32
    %1 = arith.extui %0 : i1 to i32
    %c0_i32_0 = arith.constant 0 : i32
    %2 = arith.cmpi ne, %1, %c0_i32_0 : i32
    scf.if %2 {
      %cst_16 = arith.constant 0.000000e+00 : f32
      %22 = vector.broadcast %cst_16 : f32 to vector<8x32xf32>
      %c0_17 = arith.constant 0 : index
      %c0_18 = arith.constant 0 : index
      %23 = vector.load %arg6[%c0_17, %c0_18] : memref<8x32xf32, #tpu.memory_space<vmem>>, vector<8x32xf32>
      tpu.vector_store %arg6[%c0_17, %c0_18], %22 {strides = array<i32>} : memref<8x32xf32, #tpu.memory_space<vmem>>, vector<8x32xf32>,
    } else {
    }
    %c0 = arith.constant 0 : index
    %c0_1 = arith.constant 0 : index
    %3 = vector.load %arg2[%c0, %c0_1] : memref<8x32xf32, #tpu.memory_space<vmem>>, vector<8x32xf32>
    %c0_2 = arith.constant 0 : index
    %c0_3 = arith.constant 0 : index
    %4 = vector.load %arg3[%c0_2, %c0_3] : memref<32x128xf32, #tpu.memory_space<vmem>>, vector<32x128xf32>
    %cst = arith.constant dense<0.000000e+00> : vector<8x128xf32>
    %5 = tpu.matmul %3, %4, %cst {dimension_numbers = #tpu.dot_dimension_numbers<[1], [0], [0], [1], [0, 0, 1, 1], [], []>} : vector<8x32xf32>, vector<32x128xf32>, vector<8x128xf32> -> vector<8x128xf32>
    %cst_4 = arith.constant 5.000000e-01 : f32
    %6 = vector.broadcast %cst_4 : f32 to vector<8x128xf32>
    %7 = arith.mulf %6, %5 : vector<8x128xf32>
    %cst_5 = arith.constant 0.707106769 : f32
    %8 = vector.broadcast %cst_5 : f32 to vector<8x128xf32>
    %9 = arith.mulf %5, %8 : vector<8x128xf32>
    %10 = math.erf %9 : vector<8x128xf32>
    %cst_6 = arith.constant 1.000000e+00 : f32
    %11 = vector.broadcast %cst_6 : f32 to vector<8x128xf32>
    %12 = arith.addf %11, %10 : vector<8x128xf32>
    %13 = arith.mulf %7, %12 : vector<8x128xf32>
    %c0_7 = arith.constant 0 : index
    %c0_8 = arith.constant 0 : index
    %14 = vector.load %arg6[%c0_7, %c0_8] : memref<8x32xf32, #tpu.memory_space<vmem>>, vector<8x32xf32>
    %c0_9 = arith.constant 0 : index
    %c0_10 = arith.constant 0 : index
    %15 = vector.load %arg4[%c0_9, %c0_10] : memref<128x32xf32, #tpu.memory_space<vmem>>, vector<128x32xf32>
    %cst_11 = arith.constant dense<0.000000e+00> : vector<8x32xf32>
    %16 = tpu.matmul %13, %15, %cst_11 {dimension_numbers = #tpu.dot_dimension_numbers<[1], [0], [0], [1], [0, 0, 1, 1], [], []>} : vector<8x128xf32>, vector<128x32xf32>, vector<8x32xf32> -> vector<8x32xf32>
    %17 = arith.addf %14, %16 : vector<8x32xf32>
    %c0_12 = arith.constant 0 : index
    %c0_13 = arith.constant 0 : index
    %18 = vector.load %arg6[%c0_12, %c0_13] : memref<8x32xf32, #tpu.memory_space<vmem>>, vector<8x32xf32>
    tpu.vector_store %arg6[%c0_12, %c0_13], %17 {strides = array<i32>} : memref<8x32xf32, #tpu.memory_space<vmem>>, vector<8x32xf32>,
    %c0_i32_14 = arith.constant 0 : i32
    %19 = arith.cmpi eq, %arg1, %c0_i32_14 : i32
    %20 = arith.extui %19 : i1 to i32
    %c0_i32_15 = arith.constant 0 : i32
    %21 = arith.cmpi ne, %20, %c0_i32_15 : i32
    scf.if %21 {
      %c0_16 = arith.constant 0 : index
      %c0_17 = arith.constant 0 : index
      %22 = vector.load %arg6[%c0_16, %c0_17] : memref<8x32xf32, #tpu.memory_space<vmem>>, vector<8x32xf32>
      %c0_18 = arith.constant 0 : index
      %c0_19 = arith.constant 0 : index
      %23 = vector.load %arg5[%c0_18, %c0_19] : memref<8x32xf32, #tpu.memory_space<vmem>>, vector<8x32xf32>
      tpu.vector_store %arg5[%c0_18, %c0_19], %22 {strides = array<i32>} : memref<8x32xf32, #tpu.memory_space<vmem>>, vector<8x32xf32>,
    } else {
    }
    return
  }
  func.func @transform_0(%arg0: i32, %arg1: i32) -> (i32, i32) {
    %c0_i32 = arith.constant 0 : i32
    %c0_i32_0 = arith.constant 0 : i32
    return %arg0, %c0_i32 : i32, i32
  }
  func.func @transform_1(%arg0: i32, %arg1: i32) -> (i32, i32) {
    %c0_i32 = arith.constant 0 : i32
    %c0_i32_0 = arith.constant 0 : i32
    return %c0_i32, %arg1 : i32, i32
  }
  func.func @transform_2(%arg0: i32, %arg1: i32) -> (i32, i32) {
    %c0_i32 = arith.constant 0 : i32
    %c0_i32_0 = arith.constant 0 : i32
    return %arg1, %c0_i32 : i32, i32
  }
  func.func @transform_3(%arg0: i32, %arg1: i32) -> (i32, i32) {
    %c0_i32 = arith.constant 0 : i32
    %c0_i32_0 = arith.constant 0 : i32
    return %arg0, %c0_i32 : i32, i32
  }
}

module attributes {stable_mosaic.version = 11 : i64} {
  func.func @_mlp_kernel(%arg0: i32, %arg1: i32, %arg2: memref<8x32xf32, #tpu.memory_space<vmem>>, %arg3: memref<32x128xf32, #tpu.memory_space<vmem>>, %arg4: memref<128x32xf32, #tpu.memory_space<vmem>>, %arg5: memref<8x32xf32, #tpu.memory_space<vmem>>, %arg6: memref<8x32xf32, #tpu.memory_space<vmem>>) attributes {dimension_semantics = [#tpu.dimension_semantics<parallel>, #tpu.dimension_semantics<arbitrary>], iteration_bounds = array<i64: 2, 1>, scalar_prefetch = 0 : i64, scratch_operands = 1 : i64, tpu.core_type = #tpu.core_type<tc>, window_params = [{transform_indices = @transform_0, window_bounds = array<i64: 8, 32>}, {transform_indices = @transform_1, window_bounds = array<i64: 32, 128>}, {transform_indices = @transform_2, window_bounds = array<i64: 128, 32>}, {transform_indices = @transform_3, window_bounds = array<i64: 8, 32>}]} {
    %c0_i32 = arith.constant 0 : i32
    %0 = arith.cmpi eq, %arg1, %c0_i32 : i32
    %1 = arith.extui %0 : i1 to i32
    %c0_i32_0 = arith.constant 0 : i32
    %2 = arith.cmpi ne, %1, %c0_i32_0 : i32
    scf.if %2 {
      %cst_16 = arith.constant 0.000000e+00 : f32
      %22 = vector.broadcast %cst_16 : f32 to vector<8x32xf32>
      %c0_17 = arith.constant 0 : index
      %c0_18 = arith.constant 0 : index
      %23 = vector.load %arg6[%c0_17, %c0_18] : memref<8x32xf32, #tpu.memory_space<vmem>>, vector<8x32xf32>
      tpu.vector_store %arg6[%c0_17, %c0_18], %22 {strides = array<i32>} : memref<8x32xf32, #tpu.memory_space<vmem>>, vector<8x32xf32>,
    } else {
    }
    %c0 = arith.constant 0 : index
    %c0_1 = arith.constant 0 : index
    %3 = vector.load %arg2[%c0, %c0_1] : memref<8x32xf32, #tpu.memory_space<vmem>>, vector<8x32xf32>
    %c0_2 = arith.constant 0 : index
    %c0_3 = arith.constant 0 : index
    %4 = vector.load %arg3[%c0_2, %c0_3] : memref<32x128xf32, #tpu.memory_space<vmem>>, vector<32x128xf32>
    %cst = arith.constant dense<0.000000e+00> : vector<8x128xf32>
    %5 = tpu.matmul %3, %4, %cst {dimension_numbers = #tpu.dot_dimension_numbers<[1], [0], [0], [1], [0, 0, 1, 1], [], []>} : vector<8x32xf32>, vector<32x128xf32>, vector<8x128xf32> -> vector<8x128xf32>
    %cst_4 = arith.constant 5.000000e-01 : f32
    %6 = vector.broadcast %cst_4 : f32 to vector<8x128xf32>
    %7 = arith.mulf %6, %5 : vector<8x128xf32>
    %cst_5 = arith.constant 0.707106769 : f32
    %8 = vector.broadcast %cst_5 : f32 to vector<8x128xf32>
    %9 = arith.mulf %5, %8 : vector<8x128xf32>
    %10 = math.erf %9 : vector<8x128xf32>
    %cst_6 = arith.constant 1.000000e+00 : f32
    %11 = vector.broadcast %cst_6 : f32 to vector<8x128xf32>
    %12 = arith.addf %11, %10 : vector<8x128xf32>
    %13 = arith.mulf %7, %12 : vector<8x128xf32>
    %c0_7 = arith.constant 0 : index
    %c0_8 = arith.constant 0 : index
    %14 = vector.load %arg6[%c0_7, %c0_8] : memref<8x32xf32, #tpu.memory_space<vmem>>, vector<8x32xf32>
    %c0_9 = arith.constant 0 : index
    %c0_10 = arith.constant 0 : index
    %15 = vector.load %arg4[%c0_9, %c0_10] : memref<128x32xf32, #tpu.memory_space<vmem>>, vector<128x32xf32>
    %cst_11 = arith.constant dense<0.000000e+00> : vector<8x32xf32>
    %16 = tpu.matmul %13, %15, %cst_11 {dimension_numbers = #tpu.dot_dimension_numbers<[1], [0], [0], [1], [0, 0, 1, 1], [], []>} : vector<8x128xf32>, vector<128x32xf32>, vector<8x32xf32> -> vector<8x32xf32>
    %17 = arith.addf %14, %16 : vector<8x32xf32>
    %c0_12 = arith.constant 0 : index
    %c0_13 = arith.constant 0 : index
    %18 = vector.load %arg6[%c0_12, %c0_13] : memref<8x32xf32, #tpu.memory_space<vmem>>, vector<8x32xf32>
    tpu.vector_store %arg6[%c0_12, %c0_13], %17 {strides = array<i32>} : memref<8x32xf32, #tpu.memory_space<vmem>>, vector<8x32xf32>,
    %c0_i32_14 = arith.constant 0 : i32
    %19 = arith.cmpi eq, %arg1, %c0_i32_14 : i32
    %20 = arith.extui %19 : i1 to i32
    %c0_i32_15 = arith.constant 0 : i32
    %21 = arith.cmpi ne, %20, %c0_i32_15 : i32
    scf.if %21 {
      %c0_16 = arith.constant 0 : index
      %c0_17 = arith.constant 0 : index
      %22 = vector.load %arg6[%c0_16, %c0_17] : memref<8x32xf32, #tpu.memory_space<vmem>>, vector<8x32xf32>
      %c0_18 = arith.constant 0 : index
      %c0_19 = arith.constant 0 : index
      %23 = vector.load %arg5[%c0_18, %c0_19] : memref<8x32xf32, #tpu.memory_space<vmem>>, vector<8x32xf32>
      tpu.vector_store %arg5[%c0_18, %c0_19], %22 {strides = array<i32>} : memref<8x32xf32, #tpu.memory_space<vmem>>, vector<8x32xf32>,
    } else {
    }
    return
  }
  func.func @transform_0(%arg0: i32, %arg1: i32) -> (i32, i32) {
    %c0_i32 = arith.constant 0 : i32
    %c0_i32_0 = arith.constant 0 : i32
    return %arg0, %c0_i32 : i32, i32
  }
  func.func @transform_1(%arg0: i32, %arg1: i32) -> (i32, i32) {
    %c0_i32 = arith.constant 0 : i32
    %c0_i32_0 = arith.constant 0 : i32
    return %c0_i32, %arg1 : i32, i32
  }
  func.func @transform_2(%arg0: i32, %arg1: i32) -> (i32, i32) {
    %c0_i32 = arith.constant 0 : i32
    %c0_i32_0 = arith.constant 0 : i32
    return %arg1, %c0_i32 : i32, i32
  }
  func.func @transform_3(%arg0: i32, %arg1: i32) -> (i32, i32) {
    %c0_i32 = arith.constant 0 : i32
    %c0_i32_0 = arith.constant 0 : i32
    return %arg0, %c0_i32 : i32, i32
  }
}

</mosaic_0001>

<llo_original>
// kernel: tpu_custom_call.1
$region0: #{tpu_custom_call.1}
  #allocation0 [shape = 'u32[]', space=smem, size = 0x4, offset = 0x4, fixed_abs, tag = 'smem constant byte address 0x4 - core index']
  #allocation1 [shape = 'u32[144,128]{1,0:T(1,128)}', space=vmem, size = 0x12000, scoped, tag = 'internal scratch']
  #allocation2 [shape = 'f32[8,32]{1,0:T(8,128)}', space=vmem, size = 0x1000, scoped, tag = 'scratch operand']
  %s0 = inlined_call_operand.hbm [shape: f32[16,32], index: 0, kind: input, shape index: {}]
  %s1 = inlined_call_operand.hbm [shape: f32[32,128], index: 1, kind: input, shape index: {}]
  %s2 = inlined_call_operand.hbm [shape: f32[128,32], index: 2, kind: input, shape index: {}]
  %s3 = inlined_call_operand.hbm [shape: f32[16,32], index: 3, kind: output, shape index: {}]
  %s4 = sld [smem:[#allocation0]]
  $region65: #{tpu_custom_call.1} parent=0
    _
  %s6 = ssub.s32 1, %s4
  %s7 = scalar_select 0, %s6, %s4
  $region1: #{tpu_custom_call.1} parent=0
    #allocation3 [shape = 'u8[8192]{0}', space=vmem, size = 0x2000, scoped, tag = 'input window, operand 0']
    #allocation4 [shape = 's32[2]{0}', space=sflag, size = 0x8, scoped, tag = 'scoped memory for tpu_custom_call.1']
    #allocation5 [shape = 's32[2]{0}', space=sflag, size = 0x8, scoped, tag = 'scoped memory for tpu_custom_call.1']
    #allocation6 [shape = 'u8[16384]{0}', space=vmem, size = 0x4000, scoped, tag = 'input window, operand 1, single buffered']
    #allocation7 [shape = 's32[1]{0}', space=sflag, size = 0x4, scoped, tag = 'scoped memory for tpu_custom_call.1']
    #allocation8 [shape = 'u8[65536]{0}', space=vmem, size = 0x10000, scoped, tag = 'input window, operand 2, single buffered']
    #allocation9 [shape = 'u8[8192]{0}', space=vmem, size = 0x2000, scoped, tag = 'output window, operand 0']
    %8 = vsyncpa [#allocation4], 0
    %s9 = scalar_lea.sflag [#allocation4], 1
    %10 = vsyncpa %s9, 0
    %11 = vsyncpa [#allocation7], 0
    %12 = vsyncpa [#allocation5], 0
    %s13 = scalar_lea.sflag [#allocation5], 1
    %14 = vsyncpa %s13, 0
    loop: start=0, step=1, limit=4
    $region2: #{tpu_custom_call.1} parent=1 // loop_pre_header
      _
    $region3: #{tpu_custom_call.1} parent=1 // loop_header
      %s16 = sphi 0, %s20
      %p17 = scmp.ge.s32.totalorder %s16, 4
      %s23 = sphi 0, %s35
      %s24 = sphi 0, %s31
      %s25 = sphi 0, %s23
      %s26 = sphi 0, %s24
      %s27 = sphi 0, %s25
      %s28 = sphi 0, %s26
      %s38 = sphi 0, %s40
      %s41 = sphi 0, %s38
      %s42 = sphi 0, %s41
      %s58 = sphi 0, %s42
      %s64 = sphi 0, %s66
      %s67 = sphi 0, %s64
      %s68 = sphi 0, %s67
      %s84 = sphi 0, %s68
      %s90 = sphi 0, %s92
      %s93 = sphi 0, %s90
      %s94 = sphi 0, %s93
      %s110 = sphi 0, %s94
      %s116 = sphi 0, %s118
      %s119 = sphi 0, %s116
      %s120 = sphi 0, %s119
      %s136 = sphi 0, %s120
    $region4: #{tpu_custom_call.1} parent=1 // loop_header_branch
      %19 = sbr.rel (%p17) target = $region8
    $region5: #{tpu_custom_call.1} parent=1 // loop_body
      %s21 = ssub.s32 %s16, 1
      %s22 = ssub.s32 %s16, 2
      %s29 = sadd.s32 1, %s24
      %p30 = scmp.ge.s32.totalorder %s29, 1
      %s31 = scalar_select %p30, 0, %s29
      %s32 = sadd.s32 1, %s23
      %s33 = scalar_select %p30, %s32, %s23
      %p34 = scmp.ge.s32.totalorder %s33, 2
      %s35 = scalar_select %p34, 0, %s33
      %s36 = ssub.s32 %s23, %s35
      %p37 = scmp.eq.s32.totalorder %s36, 0
      %s39 = sadd.s32 %s38, 1
      %s40 = scalar_select %p37, %s38, %s39
      %p43 = pneg %p37
      %p44 = scmp.eq.s32.totalorder %s16, 1
      %p45 = por %p43, %p44
      %p46 = scmp.ne.s32.totalorder %s38, %s41
      %p47 = scmp.eq.s32.totalorder %s16, 0
      %p48 = por %p46, %p47
      %p49 = scmp.ne.s32.totalorder %s38, %s41
      %p50 = scmp.eq.s32.totalorder %s21, 1
      %p51 = por %p49, %p50
      %p52 = scmp.ne.s32.totalorder %s41, %s42
      %p53 = scmp.eq.s32.totalorder %s21, 0
      %p54 = por %p52, %p53
      %p55 = scmp.ne.s32.totalorder %s41, %s42
      %p56 = scmp.eq.s32.totalorder %s22, 1
      %p57 = por %p55, %p56
      %p59 = scmp.ne.s32.totalorder %s42, %s58
      %p60 = scmp.eq.s32.totalorder %s22, 0
      %p61 = por %p59, %p60
      %s62 = ssub.s32 %s24, %s31
      %p63 = scmp.eq.s32.totalorder %s62, 0
      %s65 = sadd.s32 %s64, 1
      %s66 = scalar_select %p63, %s64, %s65
      %p69 = pneg %p63
      %p70 = scmp.eq.s32.totalorder %s16, 1
      %p71 = por %p69, %p70
      %p72 = scmp.ne.s32.totalorder %s64, %s67
      %p73 = scmp.eq.s32.totalorder %s16, 0
      %p74 = por %p72, %p73
      %p75 = scmp.ne.s32.totalorder %s64, %s67
      %p76 = scmp.eq.s32.totalorder %s21, 1
      %p77 = por %p75, %p76
      %p78 = scmp.ne.s32.totalorder %s67, %s68
      %p79 = scmp.eq.s32.totalorder %s21, 0
      %p80 = por %p78, %p79
      %p81 = scmp.ne.s32.totalorder %s67, %s68
      %p82 = scmp.eq.s32.totalorder %s22, 1
      %p83 = por %p81, %p82
      %p85 = scmp.ne.s32.totalorder %s68, %s84
      %p86 = scmp.eq.s32.totalorder %s22, 0
      %p87 = por %p85, %p86
      %s88 = ssub.s32 %s24, %s31
      %p89 = scmp.eq.s32.totalorder %s88, 0
      %s91 = sadd.s32 %s90, 1
      %s92 = scalar_select %p89, %s90, %s91
      %p95 = pneg %p89
      %p96 = scmp.eq.s32.totalorder %s16, 1
      %p97 = por %p95, %p96
      %p98 = scmp.ne.s32.totalorder %s90, %s93
      %p99 = scmp.eq.s32.totalorder %s16, 0
      %p100 = por %p98, %p99
      %p101 = scmp.ne.s32.totalorder %s90, %s93
      %p102 = scmp.eq.s32.totalorder %s21, 1
      %p103 = por %p101, %p102
      %p104 = scmp.ne.s32.totalorder %s93, %s94
      %p105 = scmp.eq.s32.totalorder %s21, 0
      %p106 = por %p104, %p105
      %p107 = scmp.ne.s32.totalorder %s93, %s94
      %p108 = scmp.eq.s32.totalorder %s22, 1
      %p109 = por %p107, %p108
      %p111 = scmp.ne.s32.totalorder %s94, %s110
      %p112 = scmp.eq.s32.totalorder %s22, 0
      %p113 = por %p111, %p112
      %s114 = ssub.s32 %s23, %s35
      %p115 = scmp.eq.s32.totalorder %s114, 0
      %s117 = sadd.s32 %s116, 1
      %s118 = scalar_select %p115, %s116, %s117
      %p121 = pneg %p115
      %p122 = scmp.eq.s32.totalorder %s16, 1
      %p123 = por %p121, %p122
      %p124 = scmp.ne.s32.totalorder %s116, %s119
      %p125 = scmp.eq.s32.totalorder %s16, 0
      %p126 = por %p124, %p125
      %p127 = scmp.ne.s32.totalorder %s116, %s119
      %p128 = scmp.eq.s32.totalorder %s21, 1
      %p129 = por %p127, %p128
      %p130 = scmp.ne.s32.totalorder %s119, %s120
      %p131 = scmp.eq.s32.totalorder %s21, 0
      %p132 = por %p130, %p131
      %p133 = scmp.ne.s32.totalorder %s119, %s120
      %p134 = scmp.eq.s32.totalorder %s22, 1
      %p135 = por %p133, %p134
      %p137 = scmp.ne.s32.totalorder %s120, %s136
      %p138 = scmp.eq.s32.totalorder %s22, 0
      %p139 = por %p137, %p138
      %p140 = scmp.le.s32.totalorder 1, %s16
      %p141 = scmp.lt.s32.totalorder %s16, 3
      %p142 = pnand %p140, %p141
      %p143 = pneg %p142
      // Predicated region
      $region9: #{tpu_custom_call.1} parent=5 // pred_check
        _
      $region10: #{tpu_custom_call.1} parent=5 // pred_check_branch
        %145 = sbr.rel (%p142) target = $region12
      $region11: #{tpu_custom_call.1} parent=5 // pred_region
        %s146 = ssub.s32 %s16, 1
        // Predicated region
        $region13: #{tpu_custom_call.1} parent=11 // pred_check
          %p147 = pneg %p80
        $region14: #{tpu_custom_call.1} parent=11 // pred_check_branch
          %149 = sbr.rel (%p147) target = $region16
        $region15: #{tpu_custom_call.1} parent=11 // pred_region
          %s151 = ssub.s32 512, 512
          %152 = vsyncadd [#allocation7], %s151
          %s153 = smul.addr %s26, 128
          %s154 = scalar_lea.hbm %s1, %s153
          %s155 = sshll.u32 [#allocation6], 4
          %s156 = int_to_ptr.vmem [resolvable:$true] %s155
          %161 = dma.hbm_to_vmem [thread:$0]  %s154, 512, %s156, [#allocation7], 128, 128, 8
        $region16: #{tpu_custom_call.1} parent=11 // pred_fallthru
          _
        // Predicated region
        $region17: #{tpu_custom_call.1} parent=11 // pred_check
          %p162 = pneg %p106
        $region18: #{tpu_custom_call.1} parent=11 // pred_check_branch
          %164 = sbr.rel (%p162) target = $region20
        $region19: #{tpu_custom_call.1} parent=11 // pred_region
          %s165 = smul.u32 16, %s26
          %s167 = ssub.s32 2048, 2048
          %168 = vsyncadd [#allocation7], %s167
          %s169 = smul.addr %s165, 128
          %s170 = scalar_lea.hbm %s2, %s169
          %s171 = sshll.u32 [#allocation8], 4
          %s172 = int_to_ptr.vmem [resolvable:$true] %s171
          %177 = dma.hbm_to_vmem [thread:$0]  %s170, 2048, %s172, [#allocation7], 128, 128, 8
        $region20: #{tpu_custom_call.1} parent=11 // pred_fallthru
          _
      $region12: #{tpu_custom_call.1} parent=5 // pred_fallthru
        _
      %p178 = scmp.lt.s32.totalorder %s16, 2
      // Predicated region
      $region21: #{tpu_custom_call.1} parent=5 // pred_check
        %p179 = pneg %p178
      $region22: #{tpu_custom_call.1} parent=5 // pred_check_branch
        %181 = sbr.rel (%p179) target = $region24
      $region23: #{tpu_custom_call.1} parent=5 // pred_region
        // Predicated region
        $region25: #{tpu_custom_call.1} parent=23 // pred_check
          %p182 = pneg %p48
        $region26: #{tpu_custom_call.1} parent=23 // pred_check_branch
          %184 = sbr.rel (%p182) target = $region28
        $region27: #{tpu_custom_call.1} parent=23 // pred_region
          %s185 = sand.u32 %s38, 1
          %s186 = scalar_lea.sflag [#allocation4], %s185
          %s187 = sand.u32 %s38, 1
          %s188 = smul.addr %s187, 8
          %s189 = scalar_lea.vmem [#allocation3], %s188
          %s191 = ssub.s32 128, 128
          %192 = vsyncadd %s186, %s191
          %s193 = smul.addr %s23, 128
          %s194 = scalar_lea.hbm %s0, %s193
          %s196 = sshll.u32 %s189, 4
          %s197 = int_to_ptr.vmem [resolvable:$true] %s196
          %199 = dma.hbm_to_vmem [thread:$0]  %s194, 128, %s197, %s186
        $region28: #{tpu_custom_call.1} parent=23 // pred_fallthru
          _
      $region24: #{tpu_custom_call.1} parent=5 // pred_fallthru
        _
      %p200 = scmp.le.s32.totalorder 1, %s16
      %p201 = scmp.lt.s32.totalorder %s16, 3
      %p202 = pnand %p200, %p201
      %p203 = pneg %p202
      // Predicated region
      $region29: #{tpu_custom_call.1} parent=5 // pred_check
        _
      $region30: #{tpu_custom_call.1} parent=5 // pred_check_branch
        %205 = sbr.rel (%p202) target = $region32
      $region31: #{tpu_custom_call.1} parent=5 // pred_region
        %s206 = ssub.s32 %s16, 1
        %s207 = sand.u32 %s41, 1
        %s208 = scalar_lea.sflag [#allocation4], %s207
        %s209 = sand.u32 %s41, 1
        %s210 = smul.addr %s209, 8
        %s211 = scalar_lea.vmem [#allocation3], %s210
        // Predicated region
        $region33: #{tpu_custom_call.1} parent=31 // pred_check
          %p212 = pneg %p54
        $region34: #{tpu_custom_call.1} parent=31 // pred_check_branch
          %214 = sbr.rel (%p212) target = $region36
        $region35: #{tpu_custom_call.1} parent=31 // pred_region
          %215 = dma.done %s208, 128
        $region36: #{tpu_custom_call.1} parent=31 // pred_fallthru
          _
        // Predicated region
        $region37: #{tpu_custom_call.1} parent=31 // pred_check
          %p216 = pneg %p80
        $region38: #{tpu_custom_call.1} parent=31 // pred_check_branch
          %218 = sbr.rel (%p216) target = $region40
        $region39: #{tpu_custom_call.1} parent=31 // pred_region
          %219 = dma.done [#allocation7], 512
        $region40: #{tpu_custom_call.1} parent=31 // pred_fallthru
          _
        // Predicated region
        $region41: #{tpu_custom_call.1} parent=31 // pred_check
          %p220 = pneg %p106
        $region42: #{tpu_custom_call.1} parent=31 // pred_check_branch
          %222 = sbr.rel (%p220) target = $region44
        $region43: #{tpu_custom_call.1} parent=31 // pred_region
          %223 = dma.done [#allocation7], 2048
        $region44: #{tpu_custom_call.1} parent=31 // pred_fallthru
          _
        %s224 = sand.u32 %s41, 1
        %s225 = scalar_lea.sflag [#allocation4], %s224
        %s226 = sand.u32 %s41, 1
        %s227 = smul.addr %s226, 8
        %s228 = scalar_lea.vmem [#allocation3], %s227
        %p229 = pneg %p54
        %p230 = pneg %p51
        %p231 = pneg %p80
        %p232 = pneg %p77
        %p233 = pneg %p106
        %p234 = pneg %p103
        %p235 = pneg %p132
        %p236 = pneg %p129
        %s237 = sand.u32 %s119, 1
        %s238 = scalar_lea.sflag [#allocation5], %s237
        %s239 = sand.u32 %s119, 1
        %s240 = smul.addr %s239, 8
        %s241 = scalar_lea.vmem [#allocation9], %s240
        %s242 = smul.u32 16, %s26
        %p243 = scmp.eq.s32.totalorder %s26, 0
        // Predicated region
        $region45: #{tpu_custom_call.1} parent=31 // pred_check
          %p244 = pneg %p243
        $region46: #{tpu_custom_call.1} parent=31 // pred_check_branch
          %246 = sbr.rel (%p244) target = $region48
        $region47: #{tpu_custom_call.1} parent=31 // pred_region
          %vm247 = vcmask 261120
          %248 = vst.msk [vmem:[#allocation2] sm:$0xff] %vm247, 0.0
        $region48: #{tpu_custom_call.1} parent=31 // pred_fallthru
          _
        %v249 = vld [vmem:[%s211] sm:$0xff]
        %v250 = vld [vmem:[#allocation6] sm:$0xff]
        %v251 = vld [vmem:[#allocation6 + $0x8] sm:$0xff]
        %v252 = vld [vmem:[#allocation6 + $0x10] sm:$0xff]
        %v253 = vld [vmem:[#allocation6 + $0x18] sm:$0xff]
        %vm254 = vcmask 261120
        %v256 = vsel %vm254, %v249, 0
        %258 = vmatprep.subr.mxu0 0.0
        %259 = vmatpush1.msra.mxu0 %v250
        %260 = vmatprep.subr.mxu0 0.0
        %261 = vmatpush1.msra.mxu0 %v251
        %262 = vmatprep.subr.mxu0 0.0
        %263 = vmatpush1.msra.mxu0 %v252
        %264 = vmatprep.subr.mxu0 0.0
        %265 = vmatpush1.msra.mxu0 %v253
        %266 = vmatprep.subr.mxu0 0.0
        %267 = vmatpush1.msra.mxu0 0.0
        %268 = vmatprep.subr.mxu0 0.0
        %269 = vmatpush1.msra.mxu0 0.0
        %270 = vmatprep.subr.mxu0 0.0
        %271 = vmatpush1.msra.mxu0 0.0
        %272 = vmatprep.subr.mxu0 0.0
        %273 = vmatpush1.msra.mxu0 0.0
        %274 = vmatprep.subr.mxu0 0.0
        %275 = vmatpush1.msra.mxu0 0.0
        %276 = vmatprep.subr.mxu0 0.0
        %277 = vmatpush1.msra.mxu0 0.0
        %278 = vmatprep.subr.mxu0 0.0
        %279 = vmatpush1.msra.mxu0 0.0
        %280 = vmatprep.subr.mxu0 0.0
        %281 = vmatpush1.msra.mxu0 0.0
        %282 = vmatprep.subr.mxu0 0.0
        %283 = vmatpush1.msra.mxu0 0.0
        %284 = vmatprep.subr.mxu0 0.0
        %285 = vmatpush1.msra.mxu0 0.0
        %286 = vmatprep.subr.mxu0 0.0
        %287 = vmatpush1.msra.mxu0 0.0
        %288 = vmatprep.subr.mxu0 0.0
        %289 = vmatpush1.msra.mxu0 0.0
        %290 = vmatprep.subr.mxu0 0.0
        %291 = vmatpush1.msra.mxu0 0.0
        %292 = vmatprep.subr.mxu0 0.0
        %293 = vmatpush1.msra.mxu0 0.0
        %294 = vmatprep.subr.mxu0 0.0
        %295 = vmatpush1.msra.mxu0 0.0
        %296 = vmatprep.subr.mxu0 0.0
        %297 = vmatpush1.msra.mxu0 0.0
        %298 = vmatprep.subr.mxu0 0.0
        %299 = vmatpush1.msra.mxu0 0.0
        %300 = vmatprep.subr.mxu0 0.0
        %301 = vmatpush1.msra.mxu0 0.0
        %302 = vmatprep.subr.mxu0 0.0
        %303 = vmatpush1.msra.mxu0 0.0
        %304 = vmatprep.subr.mxu0 0.0
        %305 = vmatpush1.msra.mxu0 0.0
        %306 = vmatprep.subr.mxu0 0.0
        %307 = vmatpush1.msra.mxu0 0.0
        %308 = vmatprep.subr.mxu0 0.0
        %309 = vmatpush1.msra.mxu0 0.0
        %310 = vmatprep.subr.mxu0 0.0
        %311 = vmatpush1.msra.mxu0 0.0
        %312 = vmatprep.subr.mxu0 0.0
        %313 = vmatpush1.msra.mxu0 0.0
        %314 = vmatprep.subr.mxu0 0.0
        %315 = vmatpush1.msra.mxu0 0.0
        %316 = vmatprep.subr.mxu0 0.0
        %317 = vmatpush1.msra.mxu0 0.0
        %318 = vmatprep.subr.mxu0 0.0
        %319 = vmatpush1.msra.mxu0 0.0
        %320 = vmatprep.subr.mxu0 0.0
        %321 = vmatpush1.msra.mxu0 0.0
        %322 = vmatprep.mubr.f32.mxu0 0.0
        %323 = vmatmul.mubr.f32.gmra.mrb[0].mxu0 %v256
        %v324 = vpop.f32.mrb[0].mxu0
        %v325 = vadd.f32 0.0, %v324
        %v326 = vpop.f32.mrb[0].mxu0
        %327 = vdwg.mxu0
        %v328 = vmul.f32 %v325, 0.5
        %v329 = vmul.f32 %v325, 0.70710677
        %v330 = verf.f32.pop %v329
        %v331 = vadd.f32 %v330, 1.0
        %v332 = vmul.f32 %v328, %v331
        %v333 = vld [vmem:[#allocation2] sm:$0xff]
        %v334 = vld [vmem:[#allocation8] sm:$0xff]
        %v335 = vld [vmem:[#allocation8 + $0x8] sm:$0xff]
        %v336 = vld [vmem:[#allocation8 + $0x10] sm:$0xff]
        %v337 = vld [vmem:[#allocation8 + $0x18] sm:$0xff]
        %v338 = vld [vmem:[#allocation8 + $0x20] sm:$0xff]
        %v339 = vld [vmem:[#allocation8 + $0x28] sm:$0xff]
        %v340 = vld [vmem:[#allocation8 + $0x30] sm:$0xff]
        %v341 = vld [vmem:[#allocation8 + $0x38] sm:$0xff]
        %v342 = vld [vmem:[#allocation8 + $0x40] sm:$0xff]
        %v343 = vld [vmem:[#allocation8 + $0x48] sm:$0xff]
        %v344 = vld [vmem:[#allocation8 + $0x50] sm:$0xff]
        %v345 = vld [vmem:[#allocation8 + $0x58] sm:$0xff]
        %v346 = vld [vmem:[#allocation8 + $0x60] sm:$0xff]
        %v347 = vld [vmem:[#allocation8 + $0x68] sm:$0xff]
        %v348 = vld [vmem:[#allocation8 + $0x70] sm:$0xff]
        %v349 = vld [vmem:[#allocation8 + $0x78] sm:$0xff]
        %350 = vmatprep.subr.mxu0 0.0
        %351 = vmatpush1.msra.mxu0 %v334
        %352 = vmatprep.subr.mxu0 0.0
        %353 = vmatpush1.msra.mxu0 %v335
        %354 = vmatprep.subr.mxu0 0.0
        %355 = vmatpush1.msra.mxu0 %v336
        %356 = vmatprep.subr.mxu0 0.0
        %357 = vmatpush1.msra.mxu0 %v337
        %358 = vmatprep.subr.mxu0 0.0
        %359 = vmatpush1.msra.mxu0 %v338
        %360 = vmatprep.subr.mxu0 0.0
        %361 = vmatpush1.msra.mxu0 %v339
        %362 = vmatprep.subr.mxu0 0.0
        %363 = vmatpush1.msra.mxu0 %v340
        %364 = vmatprep.subr.mxu0 0.0
        %365 = vmatpush1.msra.mxu0 %v341
        %366 = vmatprep.subr.mxu0 0.0
        %367 = vmatpush1.msra.mxu0 %v342
        %368 = vmatprep.subr.mxu0 0.0
        %369 = vmatpush1.msra.mxu0 %v343
        %370 = vmatprep.subr.mxu0 0.0
        %371 = vmatpush1.msra.mxu0 %v344
        %372 = vmatprep.subr.mxu0 0.0
        %373 = vmatpush1.msra.mxu0 %v345
        %374 = vmatprep.subr.mxu0 0.0
        %375 = vmatpush1.msra.mxu0 %v346
        %376 = vmatprep.subr.mxu0 0.0
        %377 = vmatpush1.msra.mxu0 %v347
        %378 = vmatprep.subr.mxu0 0.0
        %379 = vmatpush1.msra.mxu0 %v348
        %380 = vmatprep.subr.mxu0 0.0
        %381 = vmatpush1.msra.mxu0 %v349
        %382 = vmatprep.subr.mxu0 0.0
        %383 = vmatpush1.msra.mxu0 0.0
        %384 = vmatprep.subr.mxu0 0.0
        %385 = vmatpush1.msra.mxu0 0.0
        %386 = vmatprep.subr.mxu0 0.0
        %387 = vmatpush1.msra.mxu0 0.0
        %388 = vmatprep.subr.mxu0 0.0
        %389 = vmatpush1.msra.mxu0 0.0
        %390 = vmatprep.subr.mxu0 0.0
        %391 = vmatpush1.msra.mxu0 0.0
        %392 = vmatprep.subr.mxu0 0.0
        %393 = vmatpush1.msra.mxu0 0.0
        %394 = vmatprep.subr.mxu0 0.0
        %395 = vmatpush1.msra.mxu0 0.0
        %396 = vmatprep.subr.mxu0 0.0
        %397 = vmatpush1.msra.mxu0 0.0
        %398 = vmatprep.subr.mxu0 0.0
        %399 = vmatpush1.msra.mxu0 0.0
        %400 = vmatprep.subr.mxu0 0.0
        %401 = vmatpush1.msra.mxu0 0.0
        %402 = vmatprep.subr.mxu0 0.0
        %403 = vmatpush1.msra.mxu0 0.0
        %404 = vmatprep.subr.mxu0 0.0
        %405 = vmatpush1.msra.mxu0 0.0
        %406 = vmatprep.subr.mxu0 0.0
        %407 = vmatpush1.msra.mxu0 0.0
        %408 = vmatprep.subr.mxu0 0.0
        %409 = vmatpush1.msra.mxu0 0.0
        %410 = vmatprep.subr.mxu0 0.0
        %411 = vmatpush1.msra.mxu0 0.0
        %412 = vmatprep.subr.mxu0 0.0
        %413 = vmatpush1.msra.mxu0 0.0
        %414 = vmatprep.mubr.f32.mxu0 0.0
        %415 = vmatmul.mubr.f32.gmra.mrb[0].mxu0 %v332
        %v416 = vpop.f32.mrb[0].mxu0
        %v417 = vadd.f32 0.0, %v416
        %v418 = vpop.f32.mrb[0].mxu0
        %419 = vdwg.mxu0
        %v420 = vadd.f32 %v333, %v417
        %421 = vst.msk [vmem:[#allocation2] sm:$0xff] %vm254, %v420
        // Predicated region
        $region49: #{tpu_custom_call.1} parent=31 // pred_check
          %p422 = pneg %p243
        $region50: #{tpu_custom_call.1} parent=31 // pred_check_branch
          %424 = sbr.rel (%p422) target = $region52
        $region51: #{tpu_custom_call.1} parent=31 // pred_region
          %v425 = vld [vmem:[#allocation2] sm:$0xff]
          %426 = vst.msk [vmem:[%s241] sm:$0xff] %vm254, %v425
        $region52: #{tpu_custom_call.1} parent=31 // pred_fallthru
          _
        %s427 = sand.u32 %s119, 1
        %s428 = scalar_lea.sflag [#allocation5], %s427
        %s429 = sand.u32 %s119, 1
        %s430 = smul.addr %s429, 8
        %s431 = scalar_lea.vmem [#allocation9], %s430
        // Predicated region
        $region53: #{tpu_custom_call.1} parent=31 // pred_check
          %p432 = pneg %p129
        $region54: #{tpu_custom_call.1} parent=31 // pred_check_branch
          %434 = sbr.rel (%p432) target = $region56
        $region55: #{tpu_custom_call.1} parent=31 // pred_region
          %s436 = ssub.s32 128, 128
          %437 = vsyncadd %s428, %s436
          %s438 = smul.addr %s25, 128
          %s439 = scalar_lea.hbm %s3, %s438
          %s441 = sshll.u32 %s431, 4
          %s442 = int_to_ptr.vmem [resolvable:$true] %s441
          %444 = dma.vmem_to_hbm [thread:$0]  %s442, 128, %s439, %s428
        $region56: #{tpu_custom_call.1} parent=31 // pred_fallthru
          _
      $region32: #{tpu_custom_call.1} parent=5 // pred_fallthru
        _
      %p445 = scmp.le.s32.totalorder 2, %s16
      // Predicated region
      $region57: #{tpu_custom_call.1} parent=5 // pred_check
        %p446 = pneg %p445
      $region58: #{tpu_custom_call.1} parent=5 // pred_check_branch
        %448 = sbr.rel (%p446) target = $region60
      $region59: #{tpu_custom_call.1} parent=5 // pred_region
        %s449 = ssub.s32 %s16, 2
        // Predicated region
        $region61: #{tpu_custom_call.1} parent=59 // pred_check
          %p450 = pneg %p135
        $region62: #{tpu_custom_call.1} parent=59 // pred_check_branch
          %452 = sbr.rel (%p450) target = $region64
        $region63: #{tpu_custom_call.1} parent=59 // pred_region
          %s453 = sand.u32 %s120, 1
          %s454 = scalar_lea.sflag [#allocation5], %s453
          %s455 = sand.u32 %s120, 1
          %s456 = smul.addr %s455, 8
          %s457 = scalar_lea.vmem [#allocation9], %s456
          %458 = dma.done %s454, 128
        $region64: #{tpu_custom_call.1} parent=59 // pred_fallthru
          _
      $region60: #{tpu_custom_call.1} parent=5 // pred_fallthru
        _
    $region6: #{tpu_custom_call.1} parent=1 // loop_footer
      %s20 = sadd.s32 1, %s16
    $region7: #{tpu_custom_call.1} parent=1 // loop_footer_branch
      %15 = sbr.rel target = $region3
    $region8: #{tpu_custom_call.1} parent=1 // loop_exit
      _
    %459 = vsyncpa [#allocation4], 1
    %s460 = scalar_lea.sflag [#allocation4], 1
    %461 = vsyncpa %s460, 1
    %462 = vsyncpa [#allocation7], 1
    %463 = vsyncpa [#allocation5], 1
    %s464 = scalar_lea.sflag [#allocation5], 1
    %465 = vsyncpa %s464, 1

// kernel: tpu_custom_call.1
$region0: #{tpu_custom_call.1}
  #allocation0 [shape = 'u32[]', space=smem, size = 0x4, offset = 0x4, fixed_abs, tag = 'smem constant byte address 0x4 - core index']
  #allocation1 [shape = 'u32[144,128]{1,0:T(1,128)}', space=vmem, size = 0x12000, scoped, tag = 'internal scratch']
  #allocation2 [shape = 'f32[8,32]{1,0:T(8,128)}', space=vmem, size = 0x1000, scoped, tag = 'scratch operand']
  %s0 = inlined_call_operand.hbm [shape: f32[16,32], index: 0, kind: input, shape index: {}]
  %s1 = inlined_call_operand.hbm [shape: f32[32,128], index: 1, kind: input, shape index: {}]
  %s2 = inlined_call_operand.hbm [shape: f32[128,32], index: 2, kind: input, shape index: {}]
  %s3 = inlined_call_operand.hbm [shape: f32[16,32], index: 3, kind: output, shape index: {}]
  %s4 = sld [smem:[#allocation0]]
  $region65: #{tpu_custom_call.1} parent=0
    _
  %s6 = ssub.s32 1, %s4
  %s7 = scalar_select 0, %s6, %s4
  $region1: #{tpu_custom_call.1} parent=0
    #allocation3 [shape = 'u8[8192]{0}', space=vmem, size = 0x2000, scoped, tag = 'input window, operand 0']
    #allocation4 [shape = 's32[2]{0}', space=sflag, size = 0x8, scoped, tag = 'scoped memory for tpu_custom_call.1']
    #allocation5 [shape = 's32[2]{0}', space=sflag, size = 0x8, scoped, tag = 'scoped memory for tpu_custom_call.1']
    #allocation6 [shape = 'u8[16384]{0}', space=vmem, size = 0x4000, scoped, tag = 'input window, operand 1, single buffered']
    #allocation7 [shape = 's32[1]{0}', space=sflag, size = 0x4, scoped, tag = 'scoped memory for tpu_custom_call.1']
    #allocation8 [shape = 'u8[65536]{0}', space=vmem, size = 0x10000, scoped, tag = 'input window, operand 2, single buffered']
    #allocation9 [shape = 'u8[8192]{0}', space=vmem, size = 0x2000, scoped, tag = 'output window, operand 0']
    %8 = vsyncpa [#allocation4], 0
    %s9 = scalar_lea.sflag [#allocation4], 1
    %10 = vsyncpa %s9, 0
    %11 = vsyncpa [#allocation7], 0
    %12 = vsyncpa [#allocation5], 0
    %s13 = scalar_lea.sflag [#allocation5], 1
    %14 = vsyncpa %s13, 0
    loop: start=0, step=1, limit=4
    $region2: #{tpu_custom_call.1} parent=1 // loop_pre_header
      _
    $region3: #{tpu_custom_call.1} parent=1 // loop_header
      %s16 = sphi 0, %s20
      %p17 = scmp.ge.s32.totalorder %s16, 4
      %s23 = sphi 0, %s35
      %s24 = sphi 0, %s31
      %s25 = sphi 0, %s23
      %s26 = sphi 0, %s24
      %s27 = sphi 0, %s25
      %s28 = sphi 0, %s26
      %s38 = sphi 0, %s40
      %s41 = sphi 0, %s38
      %s42 = sphi 0, %s41
      %s58 = sphi 0, %s42
      %s64 = sphi 0, %s66
      %s67 = sphi 0, %s64
      %s68 = sphi 0, %s67
      %s84 = sphi 0, %s68
      %s90 = sphi 0, %s92
      %s93 = sphi 0, %s90
      %s94 = sphi 0, %s93
      %s110 = sphi 0, %s94
      %s116 = sphi 0, %s118
      %s119 = sphi 0, %s116
      %s120 = sphi 0, %s119
      %s136 = sphi 0, %s120
    $region4: #{tpu_custom_call.1} parent=1 // loop_header_branch
      %19 = sbr.rel (%p17) target = $region8
    $region5: #{tpu_custom_call.1} parent=1 // loop_body
      %s21 = ssub.s32 %s16, 1
      %s22 = ssub.s32 %s16, 2
      %s29 = sadd.s32 1, %s24
      %p30 = scmp.ge.s32.totalorder %s29, 1
      %s31 = scalar_select %p30, 0, %s29
      %s32 = sadd.s32 1, %s23
      %s33 = scalar_select %p30, %s32, %s23
      %p34 = scmp.ge.s32.totalorder %s33, 2
      %s35 = scalar_select %p34, 0, %s33
      %s36 = ssub.s32 %s23, %s35
      %p37 = scmp.eq.s32.totalorder %s36, 0
      %s39 = sadd.s32 %s38, 1
      %s40 = scalar_select %p37, %s38, %s39
      %p43 = pneg %p37
      %p44 = scmp.eq.s32.totalorder %s16, 1
      %p45 = por %p43, %p44
      %p46 = scmp.ne.s32.totalorder %s38, %s41
      %p47 = scmp.eq.s32.totalorder %s16, 0
      %p48 = por %p46, %p47
      %p49 = scmp.ne.s32.totalorder %s38, %s41
      %p50 = scmp.eq.s32.totalorder %s21, 1
      %p51 = por %p49, %p50
      %p52 = scmp.ne.s32.totalorder %s41, %s42
      %p53 = scmp.eq.s32.totalorder %s21, 0
      %p54 = por %p52, %p53
      %p55 = scmp.ne.s32.totalorder %s41, %s42
      %p56 = scmp.eq.s32.totalorder %s22, 1
      %p57 = por %p55, %p56
      %p59 = scmp.ne.s32.totalorder %s42, %s58
      %p60 = scmp.eq.s32.totalorder %s22, 0
      %p61 = por %p59, %p60
      %s62 = ssub.s32 %s24, %s31
      %p63 = scmp.eq.s32.totalorder %s62, 0
      %s65 = sadd.s32 %s64, 1
      %s66 = scalar_select %p63, %s64, %s65
      %p69 = pneg %p63
      %p70 = scmp.eq.s32.totalorder %s16, 1
      %p71 = por %p69, %p70
      %p72 = scmp.ne.s32.totalorder %s64, %s67
      %p73 = scmp.eq.s32.totalorder %s16, 0
      %p74 = por %p72, %p73
      %p75 = scmp.ne.s32.totalorder %s64, %s67
      %p76 = scmp.eq.s32.totalorder %s21, 1
      %p77 = por %p75, %p76
      %p78 = scmp.ne.s32.totalorder %s67, %s68
      %p79 = scmp.eq.s32.totalorder %s21, 0
      %p80 = por %p78, %p79
      %p81 = scmp.ne.s32.totalorder %s67, %s68
      %p82 = scmp.eq.s32.totalorder %s22, 1
      %p83 = por %p81, %p82
      %p85 = scmp.ne.s32.totalorder %s68, %s84
      %p86 = scmp.eq.s32.totalorder %s22, 0
      %p87 = por %p85, %p86
      %s88 = ssub.s32 %s24, %s31
      %p89 = scmp.eq.s32.totalorder %s88, 0
      %s91 = sadd.s32 %s90, 1
      %s92 = scalar_select %p89, %s90, %s91
      %p95 = pneg %p89
      %p96 = scmp.eq.s32.totalorder %s16, 1
      %p97 = por %p95, %p96
      %p98 = scmp.ne.s32.totalorder %s90, %s93
      %p99 = scmp.eq.s32.totalorder %s16, 0
      %p100 = por %p98, %p99
      %p101 = scmp.ne.s32.totalorder %s90, %s93
      %p102 = scmp.eq.s32.totalorder %s21, 1
      %p103 = por %p101, %p102
      %p104 = scmp.ne.s32.totalorder %s93, %s94
      %p105 = scmp.eq.s32.totalorder %s21, 0
      %p106 = por %p104, %p105
      %p107 = scmp.ne.s32.totalorder %s93, %s94
      %p108 = scmp.eq.s32.totalorder %s22, 1
      %p109 = por %p107, %p108
      %p111 = scmp.ne.s32.totalorder %s94, %s110
      %p112 = scmp.eq.s32.totalorder %s22, 0
      %p113 = por %p111, %p112
      %s114 = ssub.s32 %s23, %s35
      %p115 = scmp.eq.s32.totalorder %s114, 0
      %s117 = sadd.s32 %s116, 1
      %s118 = scalar_select %p115, %s116, %s117
      %p121 = pneg %p115
      %p122 = scmp.eq.s32.totalorder %s16, 1
      %p123 = por %p121, %p122
      %p124 = scmp.ne.s32.totalorder %s116, %s119
      %p125 = scmp.eq.s32.totalorder %s16, 0
      %p126 = por %p124, %p125
      %p127 = scmp.ne.s32.totalorder %s116, %s119
      %p128 = scmp.eq.s32.totalorder %s21, 1
      %p129 = por %p127, %p128
      %p130 = scmp.ne.s32.totalorder %s119, %s120
      %p131 = scmp.eq.s32.totalorder %s21, 0
      %p132 = por %p130, %p131
      %p133 = scmp.ne.s32.totalorder %s119, %s120
      %p134 = scmp.eq.s32.totalorder %s22, 1
      %p135 = por %p133, %p134
      %p137 = scmp.ne.s32.totalorder %s120, %s136
      %p138 = scmp.eq.s32.totalorder %s22, 0
      %p139 = por %p137, %p138
      %p140 = scmp.le.s32.totalorder 1, %s16
      %p141 = scmp.lt.s32.totalorder %s16, 3
      %p142 = pnand %p140, %p141
      %p143 = pneg %p142
      // Predicated region
      $region9: #{tpu_custom_call.1} parent=5 // pred_check
        _
      $region10: #{tpu_custom_call.1} parent=5 // pred_check_branch
        %145 = sbr.rel (%p142) target = $region12
      $region11: #{tpu_custom_call.1} parent=5 // pred_region
        %s146 = ssub.s32 %s16, 1
        // Predicated region
        $region13: #{tpu_custom_call.1} parent=11 // pred_check
          %p147 = pneg %p80
        $region14: #{tpu_custom_call.1} parent=11 // pred_check_branch
          %149 = sbr.rel (%p147) target = $region16
        $region15: #{tpu_custom_call.1} parent=11 // pred_region
          %s151 = ssub.s32 512, 512
          %152 = vsyncadd [#allocation7], %s151
          %s153 = smul.addr %s26, 128
          %s154 = scalar_lea.hbm %s1, %s153
          %s155 = sshll.u32 [#allocation6], 4
          %s156 = int_to_ptr.vmem [resolvable:$true] %s155
          %161 = dma.hbm_to_vmem [thread:$0]  %s154, 512, %s156, [#allocation7], 128, 128, 8
        $region16: #{tpu_custom_call.1} parent=11 // pred_fallthru
          _
        // Predicated region
        $region17: #{tpu_custom_call.1} parent=11 // pred_check
          %p162 = pneg %p106
        $region18: #{tpu_custom_call.1} parent=11 // pred_check_branch
          %164 = sbr.rel (%p162) target = $region20
        $region19: #{tpu_custom_call.1} parent=11 // pred_region
          %s165 = smul.u32 16, %s26
          %s167 = ssub.s32 2048, 2048
          %168 = vsyncadd [#allocation7], %s167
          %s169 = smul.addr %s165, 128
          %s170 = scalar_lea.hbm %s2, %s169
          %s171 = sshll.u32 [#allocation8], 4
          %s172 = int_to_ptr.vmem [resolvable:$true] %s171
          %177 = dma.hbm_to_vmem [thread:$0]  %s170, 2048, %s172, [#allocation7], 128, 128, 8
        $region20: #{tpu_custom_call.1} parent=11 // pred_fallthru
          _
      $region12: #{tpu_custom_call.1} parent=5 // pred_fallthru
        _
      %p178 = scmp.lt.s32.totalorder %s16, 2
      // Predicated region
      $region21: #{tpu_custom_call.1} parent=5 // pred_check
        %p179 = pneg %p178
      $region22: #{tpu_custom_call.1} parent=5 // pred_check_branch
        %181 = sbr.rel (%p179) target = $region24
      $region23: #{tpu_custom_call.1} parent=5 // pred_region
        // Predicated region
        $region25: #{tpu_custom_call.1} parent=23 // pred_check
          %p182 = pneg %p48
        $region26: #{tpu_custom_call.1} parent=23 // pred_check_branch
          %184 = sbr.rel (%p182) target = $region28
        $region27: #{tpu_custom_call.1} parent=23 // pred_region
          %s185 = sand.u32 %s38, 1
          %s186 = scalar_lea.sflag [#allocation4], %s185
          %s187 = sand.u32 %s38, 1
          %s188 = smul.addr %s187, 8
          %s189 = scalar_lea.vmem [#allocation3], %s188
          %s191 = ssub.s32 128, 128
          %192 = vsyncadd %s186, %s191
          %s193 = smul.addr %s23, 128
          %s194 = scalar_lea.hbm %s0, %s193
          %s196 = sshll.u32 %s189, 4
          %s197 = int_to_ptr.vmem [resolvable:$true] %s196
          %199 = dma.hbm_to_vmem [thread:$0]  %s194, 128, %s197, %s186
        $region28: #{tpu_custom_call.1} parent=23 // pred_fallthru
          _
      $region24: #{tpu_custom_call.1} parent=5 // pred_fallthru
        _
      %p200 = scmp.le.s32.totalorder 1, %s16
      %p201 = scmp.lt.s32.totalorder %s16, 3
      %p202 = pnand %p200, %p201
      %p203 = pneg %p202
      // Predicated region
      $region29: #{tpu_custom_call.1} parent=5 // pred_check
        _
      $region30: #{tpu_custom_call.1} parent=5 // pred_check_branch
        %205 = sbr.rel (%p202) target = $region32
      $region31: #{tpu_custom_call.1} parent=5 // pred_region
        %s206 = ssub.s32 %s16, 1
        %s207 = sand.u32 %s41, 1
        %s208 = scalar_lea.sflag [#allocation4], %s207
        %s209 = sand.u32 %s41, 1
        %s210 = smul.addr %s209, 8
        %s211 = scalar_lea.vmem [#allocation3], %s210
        // Predicated region
        $region33: #{tpu_custom_call.1} parent=31 // pred_check
          %p212 = pneg %p54
        $region34: #{tpu_custom_call.1} parent=31 // pred_check_branch
          %214 = sbr.rel (%p212) target = $region36
        $region35: #{tpu_custom_call.1} parent=31 // pred_region
          %215 = dma.done %s208, 128
        $region36: #{tpu_custom_call.1} parent=31 // pred_fallthru
          _
        // Predicated region
        $region37: #{tpu_custom_call.1} parent=31 // pred_check
          %p216 = pneg %p80
        $region38: #{tpu_custom_call.1} parent=31 // pred_check_branch
          %218 = sbr.rel (%p216) target = $region40
        $region39: #{tpu_custom_call.1} parent=31 // pred_region
          %219 = dma.done [#allocation7], 512
        $region40: #{tpu_custom_call.1} parent=31 // pred_fallthru
          _
        // Predicated region
        $region41: #{tpu_custom_call.1} parent=31 // pred_check
          %p220 = pneg %p106
        $region42: #{tpu_custom_call.1} parent=31 // pred_check_branch
          %222 = sbr.rel (%p220) target = $region44
        $region43: #{tpu_custom_call.1} parent=31 // pred_region
          %223 = dma.done [#allocation7], 2048
        $region44: #{tpu_custom_call.1} parent=31 // pred_fallthru
          _
        %s224 = sand.u32 %s41, 1
        %s225 = scalar_lea.sflag [#allocation4], %s224
        %s226 = sand.u32 %s41, 1
        %s227 = smul.addr %s226, 8
        %s228 = scalar_lea.vmem [#allocation3], %s227
        %p229 = pneg %p54
        %p230 = pneg %p51
        %p231 = pneg %p80
        %p232 = pneg %p77
        %p233 = pneg %p106
        %p234 = pneg %p103
        %p235 = pneg %p132
        %p236 = pneg %p129
        %s237 = sand.u32 %s119, 1
        %s238 = scalar_lea.sflag [#allocation5], %s237
        %s239 = sand.u32 %s119, 1
        %s240 = smul.addr %s239, 8
        %s241 = scalar_lea.vmem [#allocation9], %s240
        %s242 = smul.u32 16, %s26
        %p243 = scmp.eq.s32.totalorder %s26, 0
        // Predicated region
        $region45: #{tpu_custom_call.1} parent=31 // pred_check
          %p244 = pneg %p243
        $region46: #{tpu_custom_call.1} parent=31 // pred_check_branch
          %246 = sbr.rel (%p244) target = $region48
        $region47: #{tpu_custom_call.1} parent=31 // pred_region
          %vm247 = vcmask 261120
          %248 = vst.msk [vmem:[#allocation2] sm:$0xff] %vm247, 0.0
        $region48: #{tpu_custom_call.1} parent=31 // pred_fallthru
          _
        %v249 = vld [vmem:[%s211] sm:$0xff]
        %v250 = vld [vmem:[#allocation6] sm:$0xff]
        %v251 = vld [vmem:[#allocation6 + $0x8] sm:$0xff]
        %v252 = vld [vmem:[#allocation6 + $0x10] sm:$0xff]
        %v253 = vld [vmem:[#allocation6 + $0x18] sm:$0xff]
        %vm254 = vcmask 261120
        %v256 = vsel %vm254, %v249, 0
        %258 = vmatprep.subr.mxu0 0.0
        %259 = vmatpush1.msra.mxu0 %v250
        %260 = vmatprep.subr.mxu0 0.0
        %261 = vmatpush1.msra.mxu0 %v251
        %262 = vmatprep.subr.mxu0 0.0
        %263 = vmatpush1.msra.mxu0 %v252
        %264 = vmatprep.subr.mxu0 0.0
        %265 = vmatpush1.msra.mxu0 %v253
        %266 = vmatprep.subr.mxu0 0.0
        %267 = vmatpush1.msra.mxu0 0.0
        %268 = vmatprep.subr.mxu0 0.0
        %269 = vmatpush1.msra.mxu0 0.0
        %270 = vmatprep.subr.mxu0 0.0
        %271 = vmatpush1.msra.mxu0 0.0
        %272 = vmatprep.subr.mxu0 0.0
        %273 = vmatpush1.msra.mxu0 0.0
        %274 = vmatprep.subr.mxu0 0.0
        %275 = vmatpush1.msra.mxu0 0.0
        %276 = vmatprep.subr.mxu0 0.0
        %277 = vmatpush1.msra.mxu0 0.0
        %278 = vmatprep.subr.mxu0 0.0
        %279 = vmatpush1.msra.mxu0 0.0
        %280 = vmatprep.subr.mxu0 0.0
        %281 = vmatpush1.msra.mxu0 0.0
        %282 = vmatprep.subr.mxu0 0.0
        %283 = vmatpush1.msra.mxu0 0.0
        %284 = vmatprep.subr.mxu0 0.0
        %285 = vmatpush1.msra.mxu0 0.0
        %286 = vmatprep.subr.mxu0 0.0
        %287 = vmatpush1.msra.mxu0 0.0
        %288 = vmatprep.subr.mxu0 0.0
        %289 = vmatpush1.msra.mxu0 0.0
        %290 = vmatprep.subr.mxu0 0.0
        %291 = vmatpush1.msra.mxu0 0.0
        %292 = vmatprep.subr.mxu0 0.0
        %293 = vmatpush1.msra.mxu0 0.0
        %294 = vmatprep.subr.mxu0 0.0
        %295 = vmatpush1.msra.mxu0 0.0
        %296 = vmatprep.subr.mxu0 0.0
        %297 = vmatpush1.msra.mxu0 0.0
        %298 = vmatprep.subr.mxu0 0.0
        %299 = vmatpush1.msra.mxu0 0.0
        %300 = vmatprep.subr.mxu0 0.0
        %301 = vmatpush1.msra.mxu0 0.0
        %302 = vmatprep.subr.mxu0 0.0
        %303 = vmatpush1.msra.mxu0 0.0
        %304 = vmatprep.subr.mxu0 0.0
        %305 = vmatpush1.msra.mxu0 0.0
        %306 = vmatprep.subr.mxu0 0.0
        %307 = vmatpush1.msra.mxu0 0.0
        %308 = vmatprep.subr.mxu0 0.0
        %309 = vmatpush1.msra.mxu0 0.0
        %310 = vmatprep.subr.mxu0 0.0
        %311 = vmatpush1.msra.mxu0 0.0
        %312 = vmatprep.subr.mxu0 0.0
        %313 = vmatpush1.msra.mxu0 0.0
        %314 = vmatprep.subr.mxu0 0.0
        %315 = vmatpush1.msra.mxu0 0.0
        %316 = vmatprep.subr.mxu0 0.0
        %317 = vmatpush1.msra.mxu0 0.0
        %318 = vmatprep.subr.mxu0 0.0
        %319 = vmatpush1.msra.mxu0 0.0
        %320 = vmatprep.subr.mxu0 0.0
        %321 = vmatpush1.msra.mxu0 0.0
        %322 = vmatprep.mubr.f32.mxu0 0.0
        %323 = vmatmul.mubr.f32.gmra.mrb[0].mxu0 %v256
        %v324 = vpop.f32.mrb[0].mxu0
        %v325 = vadd.f32 0.0, %v324
        %v326 = vpop.f32.mrb[0].mxu0
        %327 = vdwg.mxu0
        %v328 = vmul.f32 %v325, 0.5
        %v329 = vmul.f32 %v325, 0.70710677
        %v330 = verf.f32.pop %v329
        %v331 = vadd.f32 %v330, 1.0
        %v332 = vmul.f32 %v328, %v331
        %v333 = vld [vmem:[#allocation2] sm:$0xff]
        %v334 = vld [vmem:[#allocation8] sm:$0xff]
        %v335 = vld [vmem:[#allocation8 + $0x8] sm:$0xff]
        %v336 = vld [vmem:[#allocation8 + $0x10] sm:$0xff]
        %v337 = vld [vmem:[#allocation8 + $0x18] sm:$0xff]
        %v338 = vld [vmem:[#allocation8 + $0x20] sm:$0xff]
        %v339 = vld [vmem:[#allocation8 + $0x28] sm:$0xff]
        %v340 = vld [vmem:[#allocation8 + $0x30] sm:$0xff]
        %v341 = vld [vmem:[#allocation8 + $0x38] sm:$0xff]
        %v342 = vld [vmem:[#allocation8 + $0x40] sm:$0xff]
        %v343 = vld [vmem:[#allocation8 + $0x48] sm:$0xff]
        %v344 = vld [vmem:[#allocation8 + $0x50] sm:$0xff]
        %v345 = vld [vmem:[#allocation8 + $0x58] sm:$0xff]
        %v346 = vld [vmem:[#allocation8 + $0x60] sm:$0xff]
        %v347 = vld [vmem:[#allocation8 + $0x68] sm:$0xff]
        %v348 = vld [vmem:[#allocation8 + $0x70] sm:$0xff]
        %v349 = vld [vmem:[#allocation8 + $0x78] sm:$0xff]
        %350 = vmatprep.subr.mxu0 0.0
        %351 = vmatpush1.msra.mxu0 %v334
        %352 = vmatprep.subr.mxu0 0.0
        %353 = vmatpush1.msra.mxu0 %v335
        %354 = vmatprep.subr.mxu0 0.0
        %355 = vmatpush1.msra.mxu0 %v336
        %356 = vmatprep.subr.mxu0 0.0
        %357 = vmatpush1.msra.mxu0 %v337
        %358 = vmatprep.subr.mxu0 0.0
        %359 = vmatpush1.msra.mxu0 %v338
        %360 = vmatprep.subr.mxu0 0.0
        %361 = vmatpush1.msra.mxu0 %v339
        %362 = vmatprep.subr.mxu0 0.0
        %363 = vmatpush1.msra.mxu0 %v340
        %364 = vmatprep.subr.mxu0 0.0
        %365 = vmatpush1.msra.mxu0 %v341
        %366 = vmatprep.subr.mxu0 0.0
        %367 = vmatpush1.msra.mxu0 %v342
        %368 = vmatprep.subr.mxu0 0.0
        %369 = vmatpush1.msra.mxu0 %v343
        %370 = vmatprep.subr.mxu0 0.0
        %371 = vmatpush1.msra.mxu0 %v344
        %372 = vmatprep.subr.mxu0 0.0
        %373 = vmatpush1.msra.mxu0 %v345
        %374 = vmatprep.subr.mxu0 0.0
        %375 = vmatpush1.msra.mxu0 %v346
        %376 = vmatprep.subr.mxu0 0.0
        %377 = vmatpush1.msra.mxu0 %v347
        %378 = vmatprep.subr.mxu0 0.0
        %379 = vmatpush1.msra.mxu0 %v348
        %380 = vmatprep.subr.mxu0 0.0
        %381 = vmatpush1.msra.mxu0 %v349
        %382 = vmatprep.subr.mxu0 0.0
        %383 = vmatpush1.msra.mxu0 0.0
        %384 = vmatprep.subr.mxu0 0.0
        %385 = vmatpush1.msra.mxu0 0.0
        %386 = vmatprep.subr.mxu0 0.0
        %387 = vmatpush1.msra.mxu0 0.0
        %388 = vmatprep.subr.mxu0 0.0
        %389 = vmatpush1.msra.mxu0 0.0
        %390 = vmatprep.subr.mxu0 0.0
        %391 = vmatpush1.msra.mxu0 0.0
        %392 = vmatprep.subr.mxu0 0.0
        %393 = vmatpush1.msra.mxu0 0.0
        %394 = vmatprep.subr.mxu0 0.0
        %395 = vmatpush1.msra.mxu0 0.0
        %396 = vmatprep.subr.mxu0 0.0
        %397 = vmatpush1.msra.mxu0 0.0
        %398 = vmatprep.subr.mxu0 0.0
        %399 = vmatpush1.msra.mxu0 0.0
        %400 = vmatprep.subr.mxu0 0.0
        %401 = vmatpush1.msra.mxu0 0.0
        %402 = vmatprep.subr.mxu0 0.0
        %403 = vmatpush1.msra.mxu0 0.0
        %404 = vmatprep.subr.mxu0 0.0
        %405 = vmatpush1.msra.mxu0 0.0
        %406 = vmatprep.subr.mxu0 0.0
        %407 = vmatpush1.msra.mxu0 0.0
        %408 = vmatprep.subr.mxu0 0.0
        %409 = vmatpush1.msra.mxu0 0.0
        %410 = vmatprep.subr.mxu0 0.0
        %411 = vmatpush1.msra.mxu0 0.0
        %412 = vmatprep.subr.mxu0 0.0
        %413 = vmatpush1.msra.mxu0 0.0
        %414 = vmatprep.mubr.f32.mxu0 0.0
        %415 = vmatmul.mubr.f32.gmra.mrb[0].mxu0 %v332
        %v416 = vpop.f32.mrb[0].mxu0
        %v417 = vadd.f32 0.0, %v416
        %v418 = vpop.f32.mrb[0].mxu0
        %419 = vdwg.mxu0
        %v420 = vadd.f32 %v333, %v417
        %421 = vst.msk [vmem:[#allocation2] sm:$0xff] %vm254, %v420
        // Predicated region
        $region49: #{tpu_custom_call.1} parent=31 // pred_check
          %p422 = pneg %p243
        $region50: #{tpu_custom_call.1} parent=31 // pred_check_branch
          %424 = sbr.rel (%p422) target = $region52
        $region51: #{tpu_custom_call.1} parent=31 // pred_region
          %v425 = vld [vmem:[#allocation2] sm:$0xff]
          %426 = vst.msk [vmem:[%s241] sm:$0xff] %vm254, %v425
        $region52: #{tpu_custom_call.1} parent=31 // pred_fallthru
          _
        %s427 = sand.u32 %s119, 1
        %s428 = scalar_lea.sflag [#allocation5], %s427
        %s429 = sand.u32 %s119, 1
        %s430 = smul.addr %s429, 8
        %s431 = scalar_lea.vmem [#allocation9], %s430
        // Predicated region
        $region53: #{tpu_custom_call.1} parent=31 // pred_check
          %p432 = pneg %p129
        $region54: #{tpu_custom_call.1} parent=31 // pred_check_branch
          %434 = sbr.rel (%p432) target = $region56
        $region55: #{tpu_custom_call.1} parent=31 // pred_region
          %s436 = ssub.s32 128, 128
          %437 = vsyncadd %s428, %s436
          %s438 = smul.addr %s25, 128
          %s439 = scalar_lea.hbm %s3, %s438
          %s441 = sshll.u32 %s431, 4
          %s442 = int_to_ptr.vmem [resolvable:$true] %s441
          %444 = dma.vmem_to_hbm [thread:$0]  %s442, 128, %s439, %s428
        $region56: #{tpu_custom_call.1} parent=31 // pred_fallthru
          _
      $region32: #{tpu_custom_call.1} parent=5 // pred_fallthru
        _
      %p445 = scmp.le.s32.totalorder 2, %s16
      // Predicated region
      $region57: #{tpu_custom_call.1} parent=5 // pred_check
        %p446 = pneg %p445
      $region58: #{tpu_custom_call.1} parent=5 // pred_check_branch
        %448 = sbr.rel (%p446) target = $region60
      $region59: #{tpu_custom_call.1} parent=5 // pred_region
        %s449 = ssub.s32 %s16, 2
        // Predicated region
        $region61: #{tpu_custom_call.1} parent=59 // pred_check
          %p450 = pneg %p135
        $region62: #{tpu_custom_call.1} parent=59 // pred_check_branch
          %452 = sbr.rel (%p450) target = $region64
        $region63: #{tpu_custom_call.1} parent=59 // pred_region
          %s453 = sand.u32 %s120, 1
          %s454 = scalar_lea.sflag [#allocation5], %s453
          %s455 = sand.u32 %s120, 1
          %s456 = smul.addr %s455, 8
          %s457 = scalar_lea.vmem [#allocation9], %s456
          %458 = dma.done %s454, 128
        $region64: #{tpu_custom_call.1} parent=59 // pred_fallthru
          _
      $region60: #{tpu_custom_call.1} parent=5 // pred_fallthru
        _
    $region6: #{tpu_custom_call.1} parent=1 // loop_footer
      %s20 = sadd.s32 1, %s16
    $region7: #{tpu_custom_call.1} parent=1 // loop_footer_branch
      %15 = sbr.rel target = $region3
    $region8: #{tpu_custom_call.1} parent=1 // loop_exit
      _
    %459 = vsyncpa [#allocation4], 1
    %s460 = scalar_lea.sflag [#allocation4], 1
    %461 = vsyncpa %s460, 1
    %462 = vsyncpa [#allocation7], 1
    %463 = vsyncpa [#allocation5], 1
    %s464 = scalar_lea.sflag [#allocation5], 1
    %465 = vsyncpa %s464, 1

</llo_original>
